<compile_context>
chip_gen: v7x
topology: tpu7x:2x2x1
jax: 0.10.0
libtpu: 0.0.40
codegen_flags: <defaults>
</compile_context>

<pallas_src>
import math
import numpy as np
import jax
import jax.numpy as jnp
from jax import lax
from jax.experimental import pallas as pl
from jax.experimental.pallas import tpu as pltpu

EPS = 1e-5  # nn.GroupNorm default eps


def _swish(v):
    return v * (1.0 / (1.0 + jnp.exp(-v)))


def _make_kernel(inv_n):
    def kernel(featp_ref, xcp_ref, wmain_ref, swbd_ref, vecs_ref, gmap_ref, out_ref):
        vecs = vecs_ref[...]                       # (4, PC) f32: [b1+tb, sb, gamma, beta]
        bias_main = vecs[0:1]
        bias_sc = vecs[1:2]
        gamma = vecs[2:3]
        beta = vecs[3:4]

        # Fused conv1(swish(x)) + time_emb(swish(t)): one lane-dense bf16 MXU matmul, f32 acc.
        # Features are pre-activated in the wrapper (swish(0)==0 keeps zero padding correct).
        acc = jnp.dot(featp_ref[0], wmain_ref[...],
                      preferred_element_type=jnp.float32) + bias_main

        # Shortcut 1x1 conv on raw x (block-diagonal weight -> packed lane layout directly).
        # Issued before the stats matmul so its MXU latency overlaps the serial GN section.
        sc = jnp.dot(xcp_ref[0], swbd_ref[...],
                     preferred_element_type=jnp.float32) + bias_sc

        # GroupNorm(G): one-pass stats.  Stack [sum(x); sum(x^2)] and use a single
        # (2,PC)@(PC,PC) "same-group" indicator matmul to broadcast per-group moments back to
        # every lane of the packed layout (all f32).
        moments = jnp.concatenate(
            [jnp.sum(acc, axis=0, keepdims=True),
             jnp.sum(acc * acc, axis=0, keepdims=True)], axis=0)          # (2, PC)
        stats = jnp.dot(moments, gmap_ref[...],
                        preferred_element_type=jnp.float32) * inv_n       # (2, PC)
        mu = stats[0:1]
        var = stats[1:2] - mu * mu
        hn = (acc - mu) * lax.rsqrt(var + EPS) * gamma + beta

        # act2 is applied twice in the reference forward (act2, then dropout(act2(.))).
        h = _swish(_swish(hn))
        # TODO(synk): nn.Dropout(0.1) treated as inference-mode identity (no RNG mask).

        out_ref[0] = (h + sc).astype(out_ref.dtype)

    return kernel


def prepare_resblock_params(params, n_groups, H, W, mxu_dtype=jnp.bfloat16):
    """One-time parameter packing (numpy constants; NOT on the per-call path)."""
    w1 = np.asarray(params["w1"], np.float32)            # (3,3,Cin,Cout) HWIO
    tw = np.asarray(params["tw"], np.float32)            # (Tc, Cout)
    sw = np.asarray(params["sw"], np.float32)            # (Cin, Cout)
    Cin, Cout = sw.shape
    Tc = tw.shape[0]
    HW = H * W
    Kmain = 9 * Cin + Tc

    # Lane-packing factor: pack P pixels per packed row so P*Cout == 128 (lane-dense output).
    P = 128 // Cout if (Cout <= 128 and 128 % Cout == 0
                        and HW % max(1, 128 // Cout) == 0) else 1
    PC = P * Cout

    # Pad the reduction dim so packed feature lanes (P*Kpad) are a multiple of 128.
    lanes = -(-(P * Kmain) // 128) * 128
    Kpad = lanes // P if lanes % P == 0 else Kmain

    wmain = np.concatenate([w1.reshape(9 * Cin, Cout), tw], axis=0)          # (Kmain, Cout)
    wmain = np.concatenate(
        [wmain, np.zeros((Kpad - Kmain, Cout), np.float32)], axis=0)         # (Kpad, Cout)
    eyeP = np.eye(P, dtype=np.float32)
    wmain_bd = np.kron(eyeP, wmain)                                          # (P*Kpad, PC)
    sw_bd = np.kron(eyeP, sw)                                                # (P*Cin, PC)

    b1 = np.asarray(params["b1"], np.float32).reshape(1, Cout)
    tb = np.asarray(params["tb"], np.float32).reshape(1, Cout)
    sb = np.asarray(params["sb"], np.float32).reshape(1, Cout)
    gamma = np.asarray(params["gamma"], np.float32).reshape(1, Cout)
    beta = np.asarray(params["beta"], np.float32).reshape(1, Cout)
    vecs = np.concatenate([np.tile(b1 + tb, (1, P)), np.tile(sb, (1, P)),
                           np.tile(gamma, (1, P)), np.tile(beta, (1, P))], axis=0)  # (4, PC)

    cg = Cout // n_groups
    lane_grp = (np.arange(PC) % Cout) // cg
    gmap = (lane_grp[:, None] == lane_grp[None, :]).astype(np.float32)       # (PC, PC)

    return {
        "wmain_bd": jnp.asarray(wmain_bd, mxu_dtype),
        "sw_bd": jnp.asarray(sw_bd, mxu_dtype),
        "vecs": jnp.asarray(vecs, jnp.float32),
        "gmap": jnp.asarray(gmap, jnp.float32),
        "P": P, "Kpad": Kpad, "Kmain": Kmain,
        "Cin": Cin, "Cout": Cout, "Tc": Tc,
        "inv_n": 1.0 / float(HW * cg),
        "mxu_dtype": mxu_dtype,
    }


def resblock_forward(x_nchw, t, packed):
    B, Cin, H, W = x_nchw.shape
    P, Kpad, Kmain = packed["P"], packed["Kpad"], packed["Kmain"]
    Cout, Tc = packed["Cout"], packed["Tc"]
    mxu_dtype = packed["mxu_dtype"]
    HW = H * W
    HWp = HW // P
    PC = P * Cout

    # ---- wrapper glue: activation applied ONCE (pre-duplication) + layout packing only ----
    x_nhwc = jnp.transpose(x_nchw, (0, 2, 3, 1)).astype(jnp.float32)
    xact = _swish(x_nhwc)                                   # swish before 9x im2col duplication
    xpad = jnp.pad(xact, ((0, 0), (1, 1), (1, 1), (0, 0)))  # swish(0)==0 -> zero pad stays valid
    taps = [xpad[:, dy:dy + H, dx:dx + W, :] for dy in range(3) for dx in range(3)]
    t_act = _swish(t.astype(jnp.float32))
    t_b = jnp.broadcast_to(t_act[:, None, None, :], (B, H, W, Tc))
    feat = jnp.concatenate(taps + [t_b], axis=-1)                          # (B, H, W, Kmain)
    feat = jnp.pad(feat, ((0, 0), (0, 0), (0, 0), (0, Kpad - Kmain)))      # lane-dense pad
    featp = feat.reshape(B, HWp, P * Kpad).astype(mxu_dtype)
    xcp = x_nhwc.reshape(B, HWp, P * Cin).astype(mxu_dtype)                # raw x for shortcut

    kernel = _make_kernel(packed["inv_n"])
    out_p = pl.pallas_call(
        kernel,
        out_shape=jax.ShapeDtypeStruct((B, HWp, PC), jnp.float32),
        grid_spec=pltpu.PrefetchScalarGridSpec(
            num_scalar_prefetch=0,
            grid=(B,),
            in_specs=[
                pl.BlockSpec((1, HWp, P * Kpad), lambda b: (b, 0, 0)),   # packed [im2col | t]
                pl.BlockSpec((1, HWp, P * Cin), lambda b: (b, 0, 0)),    # packed raw x
                pl.BlockSpec((P * Kpad, PC), lambda b: (0, 0)),          # block-diag [w1; tw]
                pl.BlockSpec((P * Cin, PC), lambda b: (0, 0)),           # block-diag shortcut w
                pl.BlockSpec((4, PC), lambda b: (0, 0)),                 # [b1+tb, sb, gamma, beta]
                pl.BlockSpec((PC, PC), lambda b: (0, 0)),                # same-group indicator
            ],
            out_specs=pl.BlockSpec((1, HWp, PC), lambda b: (b, 0, 0)),
        ),
        compiler_params=pltpu.CompilerParams(
            dimension_semantics=("parallel",),          # v7x: one sample per TensorCore
            vmem_limit_bytes=32 * 1024 * 1024,          # explicit budget (v7x: 64 MiB physical)
        ),
    )(featp, xcp, packed["wmain_bd"], packed["sw_bd"], packed["vecs"], packed["gmap"])

    # Pure layout glue: keep the packed (B, HW/P, P*Cout) layout instead if the consumer is
    # another fused block.
    out_nhwc = out_p.reshape(B, H, W, Cout)
    return jnp.transpose(out_nhwc, (0, 3, 1, 2))         # back to NCHW


def resblock_reference(x_nchw, t, params, n_groups, mxu_dtype=jnp.float32):
    """Pure-JAX reference of the same forward pass (mxu_dtype controls matmul operand dtype)."""
    f32 = jnp.float32
    x = jnp.transpose(x_nchw, (0, 2, 3, 1)).astype(f32)
    h = _swish(x)
    h = lax.conv_general_dilated(
        h.astype(mxu_dtype), params["w1"].astype(mxu_dtype),
        window_strides=(1, 1), padding="SAME",
        dimension_numbers=("NHWC", "HWIO", "NHWC"),
        preferred_element_type=f32) + params["b1"][0]
    temb = jnp.dot(_swish(t.astype(f32)).astype(mxu_dtype), params["tw"].astype(mxu_dtype),
                   preferred_element_type=f32) + params["tb"][0]
    h = h + temb[:, None, None, :]
    B, H, W, C = h.shape
    cg = C // n_groups
    hg = h.reshape(B, H, W, n_groups, cg)
    mu = hg.mean(axis=(1, 2, 4), keepdims=True)
    var = jnp.mean(jnp.square(hg - mu), axis=(1, 2, 4), keepdims=True)
    hn = ((hg - mu) * lax.rsqrt(var + EPS)).reshape(B, H, W, C)
    hn = hn * params["gamma"][0] + params["beta"][0]
    h = _swish(_swish(hn))
    sc = jnp.dot(x.astype(mxu_dtype), params["sw"].astype(mxu_dtype),
                 preferred_element_type=f32) + params["sb"][0]
    out = h + sc
    return jnp.transpose(out, (0, 3, 1, 2))


if __name__ == "__main__":
    B, Cin, Cout, Tc, H, W, G = 2, 8, 32, 16, 16, 16, 4

    key = jax.random.PRNGKey(0)
    ks = jax.random.split(key, 10)
    x = jax.random.normal(ks[0], (B, Cin, H, W), jnp.float32)   # NCHW like PyTorch
    t = jax.random.normal(ks[1], (B, Tc), jnp.float32)

    params = {
        "w1": jax.random.normal(ks[2], (3, 3, Cin, Cout), jnp.float32)
              * (1.0 / math.sqrt(9 * Cin)),                      # conv1 weight (HWIO)
        "b1": jax.random.normal(ks[3], (1, Cout), jnp.float32) * 0.02,
        "tw": jax.random.normal(ks[4], (Tc, Cout), jnp.float32)
              * (1.0 / math.sqrt(Tc)),                           # time_emb weight (in,out)
        "tb": jax.random.normal(ks[5], (1, Cout), jnp.float32) * 0.02,
        "gamma": 1.0 + 0.1 * jax.random.normal(ks[6], (1, Cout), jnp.float32),
        "beta": 0.05 * jax.random.normal(ks[7], (1, Cout), jnp.float32),
        "sw": jax.random.normal(ks[8], (Cin, Cout), jnp.float32)
              * (1.0 / math.sqrt(Cin)),                          # shortcut 1x1 (in,out)
        "sb": jax.random.normal(ks[9], (1, Cout), jnp.float32) * 0.02,
    }

    # Constant prep once, outside the per-call / jit path.
    packed = prepare_resblock_params(params, G, H, W, mxu_dtype=jnp.bfloat16)
    fwd = jax.jit(lambda xx, tt: resblock_forward(xx, tt, packed))

    out = jax.block_until_ready(fwd(x, t))
    assert out.shape == (B, Cout, H, W), out.shape

    # Tight check against a precision-matched reference (bf16 MXU operands, f32 accumulation).
    ref_mix = jax.block_until_ready(resblock_reference(x, t, params, G, mxu_dtype=jnp.bfloat16))
    if not jnp.allclose(out, ref_mix, rtol=2e-3, atol=2e-3):
        raise AssertionError("Pallas kernel output does not match precision-matched reference")

    # Loose sanity check against the pure-f32 reference (bounds bf16 quantization error).
    ref_f32 = jax.block_until_ready(resblock_reference(x, t, params, G, mxu_dtype=jnp.float32))
    if not jnp.allclose(out, ref_f32, rtol=1e-1, atol=1e-1):
        raise AssertionError("Pallas kernel output drifts too far from f32 reference")

    print("KERNEL_OK")
</pallas_src>

<mosaic_0001>
module attributes {stable_mosaic.version = 11 : i64} {
  func.func @kernel(%arg0: i32, %arg1: memref<1x64x384xbf16, #tpu.memory_space<vmem>>, %arg2: memref<1x64x32xbf16, #tpu.memory_space<vmem>>, %arg3: memref<384x128xbf16, #tpu.memory_space<vmem>>, %arg4: memref<32x128xbf16, #tpu.memory_space<vmem>>, %arg5: memref<4x128xf32, #tpu.memory_space<vmem>>, %arg6: memref<128x128xf32, #tpu.memory_space<vmem>>, %arg7: memref<1x64x128xf32, #tpu.memory_space<vmem>>) attributes {dimension_semantics = [#tpu.dimension_semantics<parallel>], iteration_bounds = array<i64: 2>, scalar_prefetch = 0 : i64, scratch_operands = 0 : i64, tpu.core_type = #tpu.core_type<tc>, window_params = [{transform_indices = @transform_0, window_bounds = array<i64: 1, 64, 384>}, {transform_indices = @transform_1, window_bounds = array<i64: 1, 64, 32>}, {pipeline_mode = #tpu.pipeline_mode<synchronous>, transform_indices = @transform_2, window_bounds = array<i64: 384, 128>}, {pipeline_mode = #tpu.pipeline_mode<synchronous>, transform_indices = @transform_3, window_bounds = array<i64: 32, 128>}, {pipeline_mode = #tpu.pipeline_mode<synchronous>, transform_indices = @transform_4, window_bounds = array<i64: 4, 128>}, {pipeline_mode = #tpu.pipeline_mode<synchronous>, transform_indices = @transform_5, window_bounds = array<i64: 128, 128>}, {transform_indices = @transform_6, window_bounds = array<i64: 1, 64, 128>}]} {
    %c0 = arith.constant 0 : index
    %c0_0 = arith.constant 0 : index
    %0 = vector.load %arg5[%c0, %c0_0] : memref<4x128xf32, #tpu.memory_space<vmem>>, vector<4x128xf32>
    %1 = vector.extract_strided_slice %0 {offsets = [0, 0], sizes = [1, 128], strides = [1, 1]} : vector<4x128xf32> to vector<1x128xf32>
    %2 = vector.extract_strided_slice %0 {offsets = [1, 0], sizes = [1, 128], strides = [1, 1]} : vector<4x128xf32> to vector<1x128xf32>
    %3 = vector.extract_strided_slice %0 {offsets = [2, 0], sizes = [1, 128], strides = [1, 1]} : vector<4x128xf32> to vector<1x128xf32>
    %4 = vector.extract_strided_slice %0 {offsets = [3, 0], sizes = [1, 128], strides = [1, 1]} : vector<4x128xf32> to vector<1x128xf32>
    %c0_1 = arith.constant 0 : index
    %c0_2 = arith.constant 0 : index
    %c0_3 = arith.constant 0 : index
    %5 = vector.load %arg1[%c0_1, %c0_2, %c0_3] : memref<1x64x384xbf16, #tpu.memory_space<vmem>>, vector<1x64x384xbf16>
    %6 = vector.shape_cast %5 : vector<1x64x384xbf16> to vector<64x384xbf16>
    %c0_4 = arith.constant 0 : index
    %c0_5 = arith.constant 0 : index
    %7 = vector.load %arg3[%c0_4, %c0_5] : memref<384x128xbf16, #tpu.memory_space<vmem>>, vector<384x128xbf16>
    %cst = arith.constant dense<0.000000e+00> : vector<64x128xf32>
    %8 = tpu.matmul %6, %7, %cst {dimension_numbers = #tpu.dot_dimension_numbers<[1], [0], [0], [1], [0, 0, 1, 1], [], []>} : vector<64x384xbf16>, vector<384x128xbf16>, vector<64x128xf32> -> vector<64x128xf32>
    %9 = vector.broadcast %1 : vector<1x128xf32> to vector<64x128xf32>
    %10 = arith.addf %8, %9 : vector<64x128xf32>
    %c0_6 = arith.constant 0 : index
    %c0_7 = arith.constant 0 : index
    %c0_8 = arith.constant 0 : index
    %11 = vector.load %arg2[%c0_6, %c0_7, %c0_8] : memref<1x64x32xbf16, #tpu.memory_space<vmem>>, vector<1x64x32xbf16>
    %12 = vector.shape_cast %11 : vector<1x64x32xbf16> to vector<64x32xbf16>
    %c0_9 = arith.constant 0 : index
    %c0_10 = arith.constant 0 : index
    %13 = vector.load %arg4[%c0_9, %c0_10] : memref<32x128xbf16, #tpu.memory_space<vmem>>, vector<32x128xbf16>
    %cst_11 = arith.constant dense<0.000000e+00> : vector<64x128xf32>
    %14 = tpu.matmul %12, %13, %cst_11 {dimension_numbers = #tpu.dot_dimension_numbers<[1], [0], [0], [1], [0, 0, 1, 1], [], []>} : vector<64x32xbf16>, vector<32x128xbf16>, vector<64x128xf32> -> vector<64x128xf32>
    %15 = vector.broadcast %2 : vector<1x128xf32> to vector<64x128xf32>
    %16 = arith.addf %14, %15 : vector<64x128xf32>
    %cst_12 = arith.constant dense<0.000000e+00> : vector<128xf32>
    %17 = vector.multi_reduction <add>, %10, %cst_12 [0] : vector<64x128xf32> to vector<128xf32>
    %18 = vector.shape_cast %17 : vector<128xf32> to vector<1x128xf32>
    %19 = arith.mulf %10, %10 : vector<64x128xf32>
    %cst_13 = arith.constant dense<0.000000e+00> : vector<128xf32>
    %20 = vector.multi_reduction <add>, %19, %cst_13 [0] : vector<64x128xf32> to vector<128xf32>
    %21 = vector.shape_cast %20 : vector<128xf32> to vector<1x128xf32>
    %22 = tpu.concatenate %18, %21 in 0 : vector<1x128xf32>, vector<1x128xf32> -> vector<2x128xf32>
    %c0_14 = arith.constant 0 : index
    %c0_15 = arith.constant 0 : index
    %23 = vector.load %arg6[%c0_14, %c0_15] : memref<128x128xf32, #tpu.memory_space<vmem>>, vector<128x128xf32>
    %cst_16 = arith.constant dense<0.000000e+00> : vector<2x128xf32>
    %24 = tpu.matmul %22, %23, %cst_16 {dimension_numbers = #tpu.dot_dimension_numbers<[1], [0], [0], [1], [0, 0, 1, 1], [], []>} : vector<2x128xf32>, vector<128x128xf32>, vector<2x128xf32> -> vector<2x128xf32>
    %cst_17 = arith.constant 4.8828125E-4 : f32
    %25 = vector.broadcast %cst_17 : f32 to vector<2x128xf32>
    %26 = arith.mulf %24, %25 : vector<2x128xf32>
    %27 = vector.extract_strided_slice %26 {offsets = [0, 0], sizes = [1, 128], strides = [1, 1]} : vector<2x128xf32> to vector<1x128xf32>
    %28 = vector.extract_strided_slice %26 {offsets = [1, 0], sizes = [1, 128], strides = [1, 1]} : vector<2x128xf32> to vector<1x128xf32>
    %29 = arith.mulf %27, %27 : vector<1x128xf32>
    %30 = arith.subf %28, %29 : vector<1x128xf32>
    %31 = vector.broadcast %27 : vector<1x128xf32> to vector<64x128xf32>
    %32 = arith.subf %10, %31 : vector<64x128xf32>
    %cst_18 = arith.constant 9.99999974E-6 : f32
    %33 = vector.broadcast %cst_18 : f32 to vector<1x128xf32>
    %34 = arith.addf %30, %33 : vector<1x128xf32>
    %35 = math.rsqrt %34 : vector<1x128xf32>
    %36 = vector.broadcast %35 : vector<1x128xf32> to vector<64x128xf32>
    %37 = arith.mulf %32, %36 : vector<64x128xf32>
    %38 = vector.broadcast %3 : vector<1x128xf32> to vector<64x128xf32>
    %39 = arith.mulf %37, %38 : vector<64x128xf32>
    %40 = vector.broadcast %4 : vector<1x128xf32> to vector<64x128xf32>
    %41 = arith.addf %39, %40 : vector<64x128xf32>
    %cst_19 = arith.constant 0.000000e+00 : f32
    %42 = vector.broadcast %cst_19 : f32 to vector<64x128xf32>
    %43 = arith.subf %42, %41 : vector<64x128xf32>
    %44 = math.exp %43 : vector<64x128xf32>
    %cst_20 = arith.constant 1.000000e+00 : f32
    %45 = vector.broadcast %cst_20 : f32 to vector<64x128xf32>
    %46 = arith.addf %45, %44 : vector<64x128xf32>
    %cst_21 = arith.constant 1.000000e+00 : f32
    %47 = vector.broadcast %cst_21 : f32 to vector<64x128xf32>
    %48 = arith.divf %47, %46 : vector<64x128xf32>
    %49 = arith.mulf %41, %48 : vector<64x128xf32>
    %cst_22 = arith.constant 0.000000e+00 : f32
    %50 = vector.broadcast %cst_22 : f32 to vector<64x128xf32>
    %51 = arith.subf %50, %49 : vector<64x128xf32>
    %52 = math.exp %51 : vector<64x128xf32>
    %cst_23 = arith.constant 1.000000e+00 : f32
    %53 = vector.broadcast %cst_23 : f32 to vector<64x128xf32>
    %54 = arith.addf %53, %52 : vector<64x128xf32>
    %cst_24 = arith.constant 1.000000e+00 : f32
    %55 = vector.broadcast %cst_24 : f32 to vector<64x128xf32>
    %56 = arith.divf %55, %54 : vector<64x128xf32>
    %57 = arith.mulf %49, %56 : vector<64x128xf32>
    %58 = arith.addf %57, %16 : vector<64x128xf32>
    %c0_25 = arith.constant 0 : index
    %c0_26 = arith.constant 0 : index
    %c0_27 = arith.constant 0 : index
    %59 = vector.load %arg7[%c0_25, %c0_26, %c0_27] : memref<1x64x128xf32, #tpu.memory_space<vmem>>, vector<1x64x128xf32>
    %60 = vector.shape_cast %59 : vector<1x64x128xf32> to vector<64x128xf32>
    %61 = vector.shape_cast %58 : vector<64x128xf32> to vector<1x64x128xf32>
    tpu.vector_store %arg7[%c0_25, %c0_26, %c0_27], %61 {strides = array<i32>} : memref<1x64x128xf32, #tpu.memory_space<vmem>>, vector<1x64x128xf32>,
    return
  }
  func.func @transform_0(%arg0: i32) -> (i32, i32, i32) {
    %c0_i32 = arith.constant 0 : i32
    %c0_i32_0 = arith.constant 0 : i32
    %c0_i32_1 = arith.constant 0 : i32
    return %arg0, %c0_i32, %c0_i32_0 : i32, i32, i32
  }
  func.func @transform_1(%arg0: i32) -> (i32, i32, i32) {
    %c0_i32 = arith.constant 0 : i32
    %c0_i32_0 = arith.constant 0 : i32
    %c0_i32_1 = arith.constant 0 : i32
    return %arg0, %c0_i32, %c0_i32_0 : i32, i32, i32
  }
  func.func @transform_2(%arg0: i32) -> (i32, i32) {
    %c0_i32 = arith.constant 0 : i32
    %c0_i32_0 = arith.constant 0 : i32
    %c0_i32_1 = arith.constant 0 : i32
    return %c0_i32, %c0_i32_0 : i32, i32
  }
  func.func @transform_3(%arg0: i32) -> (i32, i32) {
    %c0_i32 = arith.constant 0 : i32
    %c0_i32_0 = arith.constant 0 : i32
    %c0_i32_1 = arith.constant 0 : i32
    return %c0_i32, %c0_i32_0 : i32, i32
  }
  func.func @transform_4(%arg0: i32) -> (i32, i32) {
    %c0_i32 = arith.constant 0 : i32
    %c0_i32_0 = arith.constant 0 : i32
    %c0_i32_1 = arith.constant 0 : i32
    return %c0_i32, %c0_i32_0 : i32, i32
  }
  func.func @transform_5(%arg0: i32) -> (i32, i32) {
    %c0_i32 = arith.constant 0 : i32
    %c0_i32_0 = arith.constant 0 : i32
    %c0_i32_1 = arith.constant 0 : i32
    return %c0_i32, %c0_i32_0 : i32, i32
  }
  func.func @transform_6(%arg0: i32) -> (i32, i32, i32) {
    %c0_i32 = arith.constant 0 : i32
    %c0_i32_0 = arith.constant 0 : i32
    %c0_i32_1 = arith.constant 0 : i32
    return %arg0, %c0_i32, %c0_i32_0 : i32, i32, i32
  }
}

</mosaic_0001>

<llo_original>
// kernel: _lambda_.1
$region0: #{_lambda_.1}
  #allocation0 [shape = 'u32[]', space=smem, size = 0x4, offset = 0x4, fixed_abs, tag = 'smem constant byte address 0x4 - core index']
  #allocation1 [shape = 'u32[144,128]{1,0:T(1,128)}', space=vmem, size = 0x12000, scoped, tag = 'internal scratch']
  %s0 = inlined_call_operand.vmem [shape: bf16[2,64,384], index: 0, kind: input, shape index: {}]
  %s1 = inlined_call_operand.vmem [shape: bf16[2,64,32], index: 1, kind: input, shape index: {}]
  %s2 = inlined_call_operand.vmem [shape: bf16[384,128], index: 2, kind: input, shape index: {}]
  %s3 = inlined_call_operand.vmem [shape: bf16[32,128], index: 3, kind: input, shape index: {}]
  %s4 = inlined_call_operand.vmem [shape: f32[4,128], index: 4, kind: input, shape index: {}]
  %s5 = inlined_call_operand.vmem [shape: f32[128,128], index: 5, kind: input, shape index: {}]
  %s6 = inlined_call_operand.vmem [shape: f32[2,64,128], index: 6, kind: output, shape index: {}]
  %s7 = sld [smem:[#allocation0]]
  $region57: #{_lambda_.1} parent=0
    _
  %s9 = ssub.s32 1, %s7
  %s10 = scalar_select 0, %s9, %s7
  loop: start=0, step=1, limit=4
  $region2: #{_lambda_.1} parent=0 // loop_pre_header
    _
  $region3: #{_lambda_.1} parent=0 // loop_header
    %s12 = sphi 0, %s16
    %p13 = scmp.ge.s32.totalorder %s12, 4
    %s22 = sphi 0, %s24
    %s25 = sphi 0, %s22
    %s26 = sphi 0, %s25
    %s42 = sphi 0, %s26
    %s48 = sphi 0, %s50
    %s51 = sphi 0, %s48
    %s52 = sphi 0, %s51
    %s68 = sphi 0, %s52
    %s72 = sphi 0, %s72
    %s74 = sphi 0, %s72
    %s75 = sphi 0, %s74
    %s89 = sphi 0, %s75
    %s93 = sphi 0, %s93
    %s95 = sphi 0, %s93
    %s96 = sphi 0, %s95
    %s110 = sphi 0, %s96
    %s114 = sphi 0, %s114
    %s116 = sphi 0, %s114
    %s117 = sphi 0, %s116
    %s131 = sphi 0, %s117
    %s135 = sphi 0, %s135
    %s137 = sphi 0, %s135
    %s138 = sphi 0, %s137
    %s152 = sphi 0, %s138
    %s158 = sphi 0, %s160
    %s161 = sphi 0, %s158
    %s162 = sphi 0, %s161
    %s178 = sphi 0, %s162
  $region4: #{_lambda_.1} parent=0 // loop_header_branch
    %15 = sbr.rel (%p13) target = $region8
  $region5: #{_lambda_.1} parent=0 // loop_body
    %s17 = ssub.s32 %s12, 1
    %s18 = ssub.s32 %s12, 2
    %s19 = sadd.s32 %s12, 1
    %s20 = ssub.s32 %s12, %s19
    %p21 = scmp.eq.s32.totalorder %s20, 0
    %s23 = sadd.s32 %s22, 1
    %s24 = scalar_select %p21, %s22, %s23
    %p27 = pneg %p21
    %p28 = scmp.eq.s32.totalorder %s12, 1
    %p29 = por %p27, %p28
    %p30 = scmp.ne.s32.totalorder %s22, %s25
    %p31 = scmp.eq.s32.totalorder %s12, 0
    %p32 = por %p30, %p31
    %p33 = scmp.ne.s32.totalorder %s22, %s25
    %p34 = scmp.eq.s32.totalorder %s17, 1
    %p35 = por %p33, %p34
    %p36 = scmp.ne.s32.totalorder %s25, %s26
    %p37 = scmp.eq.s32.totalorder %s17, 0
    %p38 = por %p36, %p37
    %p39 = scmp.ne.s32.totalorder %s25, %s26
    %p40 = scmp.eq.s32.totalorder %s18, 1
    %p41 = por %p39, %p40
    %p43 = scmp.ne.s32.totalorder %s26, %s42
    %p44 = scmp.eq.s32.totalorder %s18, 0
    %p45 = por %p43, %p44
    %s46 = ssub.s32 %s12, %s19
    %p47 = scmp.eq.s32.totalorder %s46, 0
    %s49 = sadd.s32 %s48, 1
    %s50 = scalar_select %p47, %s48, %s49
    %p53 = pneg %p47
    %p54 = scmp.eq.s32.totalorder %s12, 1
    %p55 = por %p53, %p54
    %p56 = scmp.ne.s32.totalorder %s48, %s51
    %p57 = scmp.eq.s32.totalorder %s12, 0
    %p58 = por %p56, %p57
    %p59 = scmp.ne.s32.totalorder %s48, %s51
    %p60 = scmp.eq.s32.totalorder %s17, 1
    %p61 = por %p59, %p60
    %p62 = scmp.ne.s32.totalorder %s51, %s52
    %p63 = scmp.eq.s32.totalorder %s17, 0
    %p64 = por %p62, %p63
    %p65 = scmp.ne.s32.totalorder %s51, %s52
    %p66 = scmp.eq.s32.totalorder %s18, 1
    %p67 = por %p65, %p66
    %p69 = scmp.ne.s32.totalorder %s52, %s68
    %p70 = scmp.eq.s32.totalorder %s18, 0
    %p71 = por %p69, %p70
    %s73 = sadd.s32 %s72, 1
    %p76 = scmp.eq.s32.totalorder %s12, 1
    %p77 = scmp.ne.s32.totalorder %s72, %s74
    %p78 = scmp.eq.s32.totalorder %s12, 0
    %p79 = por %p77, %p78
    %p80 = scmp.ne.s32.totalorder %s72, %s74
    %p81 = scmp.eq.s32.totalorder %s17, 1
    %p82 = por %p80, %p81
    %p83 = scmp.ne.s32.totalorder %s74, %s75
    %p84 = scmp.eq.s32.totalorder %s17, 0
    %p85 = por %p83, %p84
    %p86 = scmp.ne.s32.totalorder %s74, %s75
    %p87 = scmp.eq.s32.totalorder %s18, 1
    %p88 = por %p86, %p87
    %p90 = scmp.ne.s32.totalorder %s75, %s89
    %p91 = scmp.eq.s32.totalorder %s18, 0
    %p92 = por %p90, %p91
    %s94 = sadd.s32 %s93, 1
    %p97 = scmp.eq.s32.totalorder %s12, 1
    %p98 = scmp.ne.s32.totalorder %s93, %s95
    %p99 = scmp.eq.s32.totalorder %s12, 0
    %p100 = por %p98, %p99
    %p101 = scmp.ne.s32.totalorder %s93, %s95
    %p102 = scmp.eq.s32.totalorder %s17, 1
    %p103 = por %p101, %p102
    %p104 = scmp.ne.s32.totalorder %s95, %s96
    %p105 = scmp.eq.s32.totalorder %s17, 0
    %p106 = por %p104, %p105
    %p107 = scmp.ne.s32.totalorder %s95, %s96
    %p108 = scmp.eq.s32.totalorder %s18, 1
    %p109 = por %p107, %p108
    %p111 = scmp.ne.s32.totalorder %s96, %s110
    %p112 = scmp.eq.s32.totalorder %s18, 0
    %p113 = por %p111, %p112
    %s115 = sadd.s32 %s114, 1
    %p118 = scmp.eq.s32.totalorder %s12, 1
    %p119 = scmp.ne.s32.totalorder %s114, %s116
    %p120 = scmp.eq.s32.totalorder %s12, 0
    %p121 = por %p119, %p120
    %p122 = scmp.ne.s32.totalorder %s114, %s116
    %p123 = scmp.eq.s32.totalorder %s17, 1
    %p124 = por %p122, %p123
    %p125 = scmp.ne.s32.totalorder %s116, %s117
    %p126 = scmp.eq.s32.totalorder %s17, 0
    %p127 = por %p125, %p126
    %p128 = scmp.ne.s32.totalorder %s116, %s117
    %p129 = scmp.eq.s32.totalorder %s18, 1
    %p130 = por %p128, %p129
    %p132 = scmp.ne.s32.totalorder %s117, %s131
    %p133 = scmp.eq.s32.totalorder %s18, 0
    %p134 = por %p132, %p133
    %s136 = sadd.s32 %s135, 1
    %p139 = scmp.eq.s32.totalorder %s12, 1
    %p140 = scmp.ne.s32.totalorder %s135, %s137
    %p141 = scmp.eq.s32.totalorder %s12, 0
    %p142 = por %p140, %p141
    %p143 = scmp.ne.s32.totalorder %s135, %s137
    %p144 = scmp.eq.s32.totalorder %s17, 1
    %p145 = por %p143, %p144
    %p146 = scmp.ne.s32.totalorder %s137, %s138
    %p147 = scmp.eq.s32.totalorder %s17, 0
    %p148 = por %p146, %p147
    %p149 = scmp.ne.s32.totalorder %s137, %s138
    %p150 = scmp.eq.s32.totalorder %s18, 1
    %p151 = por %p149, %p150
    %p153 = scmp.ne.s32.totalorder %s138, %s152
    %p154 = scmp.eq.s32.totalorder %s18, 0
    %p155 = por %p153, %p154
    %s156 = ssub.s32 %s12, %s19
    %p157 = scmp.eq.s32.totalorder %s156, 0
    %s159 = sadd.s32 %s158, 1
    %s160 = scalar_select %p157, %s158, %s159
    %p163 = pneg %p157
    %p164 = scmp.eq.s32.totalorder %s12, 1
    %p165 = por %p163, %p164
    %p166 = scmp.ne.s32.totalorder %s158, %s161
    %p167 = scmp.eq.s32.totalorder %s12, 0
    %p168 = por %p166, %p167
    %p169 = scmp.ne.s32.totalorder %s158, %s161
    %p170 = scmp.eq.s32.totalorder %s17, 1
    %p171 = por %p169, %p170
    %p172 = scmp.ne.s32.totalorder %s161, %s162
    %p173 = scmp.eq.s32.totalorder %s17, 0
    %p174 = por %p172, %p173
    %p175 = scmp.ne.s32.totalorder %s161, %s162
    %p176 = scmp.eq.s32.totalorder %s18, 1
    %p177 = por %p175, %p176
    %p179 = scmp.ne.s32.totalorder %s162, %s178
    %p180 = scmp.eq.s32.totalorder %s18, 0
    %p181 = por %p179, %p180
    %p182 = scmp.le.s32.totalorder 1, %s12
    %p183 = scmp.lt.s32.totalorder %s12, 3
    %p184 = pnand %p182, %p183
    %p185 = pneg %p184
    // Predicated region
    $region9: #{_lambda_.1} parent=5 // pred_check
      _
    $region10: #{_lambda_.1} parent=5 // pred_check_branch
      %187 = sbr.rel (%p184) target = $region12
    $region11: #{_lambda_.1} parent=5 // pred_region
      %s188 = ssub.s32 %s12, 1
      // Predicated region
      $region13: #{_lambda_.1} parent=11 // pred_check
        %p189 = pneg %p85
      $region14: #{_lambda_.1} parent=11 // pred_check_branch
        %191 = sbr.rel (%p189) target = $region16
      $region15: #{_lambda_.1} parent=11 // pred_region
        _
      $region16: #{_lambda_.1} parent=11 // pred_fallthru
        _
      // Predicated region
      $region17: #{_lambda_.1} parent=11 // pred_check
        %p192 = pneg %p106
      $region18: #{_lambda_.1} parent=11 // pred_check_branch
        %194 = sbr.rel (%p192) target = $region20
      $region19: #{_lambda_.1} parent=11 // pred_region
        _
      $region20: #{_lambda_.1} parent=11 // pred_fallthru
        _
      // Predicated region
      $region21: #{_lambda_.1} parent=11 // pred_check
        %p195 = pneg %p127
      $region22: #{_lambda_.1} parent=11 // pred_check_branch
        %197 = sbr.rel (%p195) target = $region24
      $region23: #{_lambda_.1} parent=11 // pred_region
        _
      $region24: #{_lambda_.1} parent=11 // pred_fallthru
        _
      // Predicated region
      $region25: #{_lambda_.1} parent=11 // pred_check
        %p198 = pneg %p148
      $region26: #{_lambda_.1} parent=11 // pred_check_branch
        %200 = sbr.rel (%p198) target = $region28
      $region27: #{_lambda_.1} parent=11 // pred_region
        _
      $region28: #{_lambda_.1} parent=11 // pred_fallthru
        _
    $region12: #{_lambda_.1} parent=5 // pred_fallthru
      _
    %p201 = scmp.lt.s32.totalorder %s12, 2
    // Predicated region
    $region29: #{_lambda_.1} parent=5 // pred_check
      %p202 = pneg %p201
    $region30: #{_lambda_.1} parent=5 // pred_check_branch
      %204 = sbr.rel (%p202) target = $region32
    $region31: #{_lambda_.1} parent=5 // pred_region
      // Predicated region
      $region33: #{_lambda_.1} parent=31 // pred_check
        %p205 = pneg %p32
      $region34: #{_lambda_.1} parent=31 // pred_check_branch
        %207 = sbr.rel (%p205) target = $region36
      $region35: #{_lambda_.1} parent=31 // pred_region
        %p208 = scmp.lt.s32.totalorder %s12, 1
        %s209 = scalar_select %p208, %s12, 1
        %s210 = smul.addr %s209, 24
        %s211 = smul.addr %s210, 4
        %s212 = scalar_lea.vmem %s0, %s211
      $region36: #{_lambda_.1} parent=31 // pred_fallthru
        _
      // Predicated region
      $region37: #{_lambda_.1} parent=31 // pred_check
        %p213 = pneg %p58
      $region38: #{_lambda_.1} parent=31 // pred_check_branch
        %215 = sbr.rel (%p213) target = $region40
      $region39: #{_lambda_.1} parent=31 // pred_region
        %p216 = scmp.lt.s32.totalorder %s12, 1
        %s217 = scalar_select %p216, %s12, 1
        %s218 = smul.addr %s217, 8
        %s219 = smul.addr %s218, 4
        %s220 = scalar_lea.vmem %s1, %s219
      $region40: #{_lambda_.1} parent=31 // pred_fallthru
        _
    $region32: #{_lambda_.1} parent=5 // pred_fallthru
      _
    %p221 = scmp.le.s32.totalorder 1, %s12
    %p222 = scmp.lt.s32.totalorder %s12, 3
    %p223 = pnand %p221, %p222
    %p224 = pneg %p223
    // Predicated region
    $region41: #{_lambda_.1} parent=5 // pred_check
      _
    $region42: #{_lambda_.1} parent=5 // pred_check_branch
      %226 = sbr.rel (%p223) target = $region44
    $region43: #{_lambda_.1} parent=5 // pred_region
      %s227 = ssub.s32 %s12, 1
      %p228 = scmp.lt.s32.totalorder %s17, 1
      %s229 = scalar_select %p228, %s17, 1
      %s230 = smul.addr %s229, 24
      %s231 = smul.addr %s230, 4
      %s232 = scalar_lea.vmem %s0, %s231
      %p233 = pneg %p38
      %p234 = pneg %p35
      %p235 = scmp.lt.s32.totalorder %s17, 1
      %s236 = scalar_select %p235, %s17, 1
      %s237 = smul.addr %s236, 8
      %s238 = smul.addr %s237, 4
      %s239 = scalar_lea.vmem %s1, %s238
      %p240 = pneg %p64
      %p241 = pneg %p61
      %p242 = pneg %p85
      %p243 = pneg %p82
      %p244 = pneg %p106
      %p245 = pneg %p103
      %p246 = pneg %p127
      %p247 = pneg %p124
      %p248 = pneg %p148
      %p249 = pneg %p145
      %p250 = pneg %p174
      %p251 = pneg %p171
      %p252 = scmp.lt.s32.totalorder %s17, 1
      %s253 = scalar_select %p252, %s17, 1
      %s254 = smul.addr %s253, 8
      %s255 = smul.addr %s254, 8
      %s256 = scalar_lea.vmem %s6, %s255
      %p257 = scmp.lt.s32.totalorder %s17, 1
      %s258 = scalar_select %p257, %s17, 1
      %s259 = smul.addr %s258, 24
      %s260 = smul.addr %s259, 4
      %s261 = scalar_lea.vmem %s0, %s260
      %p262 = scmp.lt.s32.totalorder %s17, 1
      %s263 = scalar_select %p262, %s17, 1
      %s264 = smul.addr %s263, 8
      %s265 = smul.addr %s264, 4
      %s266 = scalar_lea.vmem %s1, %s265
      %p267 = scmp.lt.s32.totalorder %s17, 1
      %s268 = scalar_select %p267, %s17, 1
      %s269 = smul.addr %s268, 8
      %s270 = smul.addr %s269, 8
      %s271 = scalar_lea.vmem %s6, %s270
      %v273 = vld [vmem:[%s4] sm:$0xf]
      %v274 = vld [vmem:[%s261] sm:$0xff]
      %v275 = vld [vmem:[%s261 + $0x8] sm:$0xf]
      %v276 = vld [vmem:[%s261 + $0xc] sm:$0xff]
      %v277 = vld [vmem:[%s261 + $0x14] sm:$0xf]
      %v278 = vld [vmem:[%s261 + $0x18] sm:$0xff]
      %v279 = vld [vmem:[%s261 + $0x20] sm:$0xf]
      %v280 = vld [vmem:[%s261 + $0x24] sm:$0xff]
      %v281 = vld [vmem:[%s261 + $0x2c] sm:$0xf]
      %v282 = vld [vmem:[%s261 + $0x30] sm:$0xff]
      %v283 = vld [vmem:[%s261 + $0x38] sm:$0xf]
      %v284 = vld [vmem:[%s261 + $0x3c] sm:$0xff]
      %v285 = vld [vmem:[%s261 + $0x44] sm:$0xf]
      %v286 = vld [vmem:[%s261 + $0x48] sm:$0xff]
      %v287 = vld [vmem:[%s261 + $0x50] sm:$0xf]
      %v288 = vld [vmem:[%s261 + $0x54] sm:$0xff]
      %v289 = vld [vmem:[%s261 + $0x5c] sm:$0xf]
      %v290 = vld [vmem:[%s2] sm:$0xf]
      %v291 = vld [vmem:[%s2 + $0x4] sm:$0xf]
      %v292 = vld [vmem:[%s2 + $0x8] sm:$0xf]
      %v293 = vld [vmem:[%s2 + $0xc] sm:$0xf]
      %v294 = vld [vmem:[%s2 + $0x10] sm:$0xf]
      %v295 = vld [vmem:[%s2 + $0x14] sm:$0xf]
      %v296 = vld [vmem:[%s2 + $0x18] sm:$0xf]
      %v297 = vld [vmem:[%s2 + $0x1c] sm:$0xf]
      %v298 = vld [vmem:[%s2 + $0x20] sm:$0xf]
      %v299 = vld [vmem:[%s2 + $0x24] sm:$0xf]
      %v300 = vld [vmem:[%s2 + $0x28] sm:$0xf]
      %v301 = vld [vmem:[%s2 + $0x2c] sm:$0xf]
      %v302 = vld [vmem:[%s2 + $0x30] sm:$0xf]
      %v303 = vld [vmem:[%s2 + $0x34] sm:$0xf]
      %v304 = vld [vmem:[%s2 + $0x38] sm:$0xf]
      %v305 = vld [vmem:[%s2 + $0x3c] sm:$0xf]
      %v306 = vld [vmem:[%s2 + $0x40] sm:$0xf]
      %v307 = vld [vmem:[%s2 + $0x44] sm:$0xf]
      %v308 = vld [vmem:[%s2 + $0x48] sm:$0xf]
      %v309 = vld [vmem:[%s2 + $0x4c] sm:$0xf]
      %v310 = vld [vmem:[%s2 + $0x50] sm:$0xf]
      %v311 = vld [vmem:[%s2 + $0x54] sm:$0xf]
      %v312 = vld [vmem:[%s2 + $0x58] sm:$0xf]
      %v313 = vld [vmem:[%s2 + $0x5c] sm:$0xf]
      %v314 = vld [vmem:[%s2 + $0x60] sm:$0xf]
      %v315 = vld [vmem:[%s2 + $0x64] sm:$0xf]
      %v316 = vld [vmem:[%s2 + $0x68] sm:$0xf]
      %v317 = vld [vmem:[%s2 + $0x6c] sm:$0xf]
      %v318 = vld [vmem:[%s2 + $0x70] sm:$0xf]
      %v319 = vld [vmem:[%s2 + $0x74] sm:$0xf]
      %v320 = vld [vmem:[%s2 + $0x78] sm:$0xf]
      %v321 = vld [vmem:[%s2 + $0x7c] sm:$0xf]
      %v322 = vld [vmem:[%s2 + $0x80] sm:$0xf]
      %v323 = vld [vmem:[%s2 + $0x84] sm:$0xf]
      %v324 = vld [vmem:[%s2 + $0x88] sm:$0xf]
      %v325 = vld [vmem:[%s2 + $0x8c] sm:$0xf]
      %v326 = vld [vmem:[%s2 + $0x90] sm:$0xf]
      %v327 = vld [vmem:[%s2 + $0x94] sm:$0xf]
      %v328 = vld [vmem:[%s2 + $0x98] sm:$0xf]
      %v329 = vld [vmem:[%s2 + $0x9c] sm:$0xf]
      %v330 = vld [vmem:[%s2 + $0xa0] sm:$0xf]
      %v331 = vld [vmem:[%s2 + $0xa4] sm:$0xf]
      %v332 = vld [vmem:[%s2 + $0xa8] sm:$0xf]
      %v333 = vld [vmem:[%s2 + $0xac] sm:$0xf]
      %v334 = vld [vmem:[%s2 + $0xb0] sm:$0xf]
      %v335 = vld [vmem:[%s2 + $0xb4] sm:$0xf]
      %v336 = vld [vmem:[%s2 + $0xb8] sm:$0xf]
      %v337 = vld [vmem:[%s2 + $0xbc] sm:$0xf]
      %v338 = vlaneseq
      %v339 = vshrl.u32 %v338, 7
      %v340 = vsub.s32 0, %v339
      %v341 = vrot.slane %v273, %v340
      %v358 = vunpack.c.l.b16 %v274
      %v359 = vunpack.c.h.b16 %v274
      %v360 = vunpack.c.l.b16 %v275
      %v361 = vunpack.c.l.b16 %v276
      %v362 = vunpack.c.h.b16 %v276
      %v363 = vunpack.c.l.b16 %v277
      %v364 = vunpack.c.l.b16 %v278
      %v365 = vunpack.c.h.b16 %v278
      %v366 = vunpack.c.l.b16 %v279
      %v367 = vunpack.c.l.b16 %v280
      %v368 = vunpack.c.h.b16 %v280
      %v369 = vunpack.c.l.b16 %v281
      %v370 = vunpack.c.l.b16 %v282
      %v371 = vunpack.c.h.b16 %v282
      %v372 = vunpack.c.l.b16 %v283
      %v373 = vunpack.c.l.b16 %v284
      %v374 = vunpack.c.h.b16 %v284
      %v375 = vunpack.c.l.b16 %v285
      %v376 = vunpack.c.l.b16 %v286
      %v377 = vunpack.c.h.b16 %v286
      %v378 = vunpack.c.l.b16 %v287
      %v379 = vunpack.c.l.b16 %v288
      %v380 = vunpack.c.h.b16 %v288
      %v381 = vunpack.c.l.b16 %v289
      %v382 = vpack.c.b16 %v361, %v358
      %v383 = vpack.c.b16 %v362, %v359
      %v384 = vpack.c.b16 %v363, %v360
      %v385 = vpack.c.b16 %v367, %v364
      %v386 = vpack.c.b16 %v368, %v365
      %v387 = vpack.c.b16 %v369, %v366
      %v388 = vpack.c.b16 %v373, %v370
      %v389 = vpack.c.b16 %v374, %v371
      %v390 = vpack.c.b16 %v375, %v372
      %v391 = vpack.c.b16 %v379, %v376
      %v392 = vpack.c.b16 %v380, %v377
      %v393 = vpack.c.b16 %v381, %v378
      %v454 = vunpack.c.l.b16 %v290
      %v455 = vunpack.c.l.b16 %v291
      %v456 = vunpack.c.l.b16 %v292
      %v457 = vunpack.c.l.b16 %v293
      %v458 = vunpack.c.l.b16 %v294
      %v459 = vunpack.c.l.b16 %v295
      %v460 = vunpack.c.l.b16 %v296
      %v461 = vunpack.c.l.b16 %v297
      %v462 = vunpack.c.l.b16 %v298
      %v463 = vunpack.c.l.b16 %v299
      %v464 = vunpack.c.l.b16 %v300
      %v465 = vunpack.c.l.b16 %v301
      %v466 = vunpack.c.l.b16 %v302
      %v467 = vunpack.c.l.b16 %v303
      %v468 = vunpack.c.l.b16 %v304
      %v469 = vunpack.c.l.b16 %v305
      %v470 = vunpack.c.l.b16 %v306
      %v471 = vunpack.c.l.b16 %v307
      %v472 = vunpack.c.l.b16 %v308
      %v473 = vunpack.c.l.b16 %v309
      %v474 = vunpack.c.l.b16 %v310
      %v475 = vunpack.c.l.b16 %v311
      %v476 = vunpack.c.l.b16 %v312
      %v477 = vunpack.c.l.b16 %v313
      %v478 = vunpack.c.l.b16 %v314
      %v479 = vunpack.c.l.b16 %v315
      %v480 = vunpack.c.l.b16 %v316
      %v481 = vunpack.c.l.b16 %v317
      %v482 = vunpack.c.l.b16 %v318
      %v483 = vunpack.c.l.b16 %v319
      %v484 = vunpack.c.l.b16 %v320
      %v485 = vunpack.c.l.b16 %v321
      %v486 = vunpack.c.l.b16 %v322
      %v487 = vunpack.c.l.b16 %v323
      %v488 = vunpack.c.l.b16 %v324
      %v489 = vunpack.c.l.b16 %v325
      %v490 = vunpack.c.l.b16 %v326
      %v491 = vunpack.c.l.b16 %v327
      %v492 = vunpack.c.l.b16 %v328
      %v493 = vunpack.c.l.b16 %v329
      %v494 = vunpack.c.l.b16 %v330
      %v495 = vunpack.c.l.b16 %v331
      %v496 = vunpack.c.l.b16 %v332
      %v497 = vunpack.c.l.b16 %v333
      %v498 = vunpack.c.l.b16 %v334
      %v499 = vunpack.c.l.b16 %v335
      %v500 = vunpack.c.l.b16 %v336
      %v501 = vunpack.c.l.b16 %v337
      %v502 = vpack.c.b16 %v455, %v454
      %v503 = vpack.c.b16 %v457, %v456
      %v504 = vpack.c.b16 %v459, %v458
      %v505 = vpack.c.b16 %v461, %v460
      %v506 = vpack.c.b16 %v463, %v462
      %v507 = vpack.c.b16 %v465, %v464
      %v508 = vpack.c.b16 %v467, %v466
      %v509 = vpack.c.b16 %v469, %v468
      %v510 = vpack.c.b16 %v471, %v470
      %v511 = vpack.c.b16 %v473, %v472
      %v512 = vpack.c.b16 %v475, %v474
      %v513 = vpack.c.b16 %v477, %v476
      %v514 = vpack.c.b16 %v479, %v478
      %v515 = vpack.c.b16 %v481, %v480
      %v516 = vpack.c.b16 %v483, %v482
      %v517 = vpack.c.b16 %v485, %v484
      %v518 = vpack.c.b16 %v487, %v486
      %v519 = vpack.c.b16 %v489, %v488
      %v520 = vpack.c.b16 %v491, %v490
      %v521 = vpack.c.b16 %v493, %v492
      %v522 = vpack.c.b16 %v495, %v494
      %v523 = vpack.c.b16 %v497, %v496
      %v524 = vpack.c.b16 %v499, %v498
      %v525 = vpack.c.b16 %v501, %v500
      %550 = vmatprep.subr.bf16.mxu0 0
      %551 = vmatpush1.bf16.msra.mxu0 %v502
      %552 = vmatprep.subr.bf16.mxu0 0
      %553 = vmatpush1.bf16.msra.mxu0 %v503
      %554 = vmatprep.subr.bf16.mxu0 0
      %555 = vmatpush1.bf16.msra.mxu0 %v504
      %556 = vmatprep.subr.bf16.mxu0 0
      %557 = vmatpush1.bf16.msra.mxu0 %v505
      %558 = vmatprep.subr.bf16.mxu0 0
      %559 = vmatpush1.bf16.msra.mxu0 %v506
      %560 = vmatprep.subr.bf16.mxu0 0
      %561 = vmatpush1.bf16.msra.mxu0 %v507
      %562 = vmatprep.subr.bf16.mxu0 0
      %563 = vmatpush1.bf16.msra.mxu0 %v508
      %564 = vmatprep.subr.bf16.mxu0 0
      %565 = vmatpush1.bf16.msra.mxu0 %v509
      %566 = vmatprep.subr.bf16.mxu0 0
      %567 = vmatpush1.bf16.msra.mxu0 %v510
      %568 = vmatprep.subr.bf16.mxu0 0
      %569 = vmatpush1.bf16.msra.mxu0 %v511
      %570 = vmatprep.subr.bf16.mxu0 0
      %571 = vmatpush1.bf16.msra.mxu0 %v512
      %572 = vmatprep.subr.bf16.mxu0 0
      %573 = vmatpush1.bf16.msra.mxu0 %v513
      %574 = vmatprep.subr.bf16.mxu0 0
      %575 = vmatpush1.bf16.msra.mxu0 %v514
      %576 = vmatprep.subr.bf16.mxu0 0
      %577 = vmatpush1.bf16.msra.mxu0 %v515
      %578 = vmatprep.subr.bf16.mxu0 0
      %579 = vmatpush1.bf16.msra.mxu0 %v516
      %580 = vmatprep.subr.bf16.mxu0 0
      %581 = vmatpush1.bf16.msra.mxu0 %v517
      %582 = vmatprep.mubr.bf16.mxu0 %v383
      %583 = vmatmul.mubr.bf16.gmra.mrb[0].mxu0 %v382
      %v584 = vpop.f32.mrb[0].mxu0
      %v585 = vadd.f32 %v341, %v584
      %v586 = vpop.f32.mrb[0].mxu0
      %v587 = vpop.f32.mrb[0].mxu0
      %v588 = vadd.f32 %v341, %v587
      %v589 = vpop.f32.mrb[0].mxu0
      %590 = vmatprep.mubr.bf16.mxu0 %v386
      %591 = vmatmul.mubr.bf16.gmra.mrb[0].mxu0 %v385
      %v592 = vpop.f32.mrb[0].mxu0
      %v593 = vadd.f32 %v341, %v592
      %v594 = vpop.f32.mrb[0].mxu0
      %v595 = vpop.f32.mrb[0].mxu0
      %v596 = vadd.f32 %v341, %v595
      %v597 = vpop.f32.mrb[0].mxu0
      %598 = vmatprep.mubr.bf16.mxu0 %v389
      %599 = vmatmul.mubr.bf16.gmra.mrb[0].mxu0 %v388
      %v600 = vpop.f32.mrb[0].mxu0
      %v601 = vadd.f32 %v341, %v600
      %v602 = vpop.f32.mrb[0].mxu0
      %v603 = vpop.f32.mrb[0].mxu0
      %v604 = vadd.f32 %v341, %v603
      %v605 = vpop.f32.mrb[0].mxu0
      %606 = vmatprep.mubr.bf16.mxu0 %v392
      %607 = vmatmul.mubr.bf16.gmra.mrb[0].mxu0 %v391
      %v608 = vpop.f32.mrb[0].mxu0
      %v609 = vadd.f32 %v341, %v608
      %v610 = vpop.f32.mrb[0].mxu0
      %v611 = vpop.f32.mrb[0].mxu0
      %v612 = vadd.f32 %v341, %v611
      %v613 = vpop.f32.mrb[0].mxu0
      %614 = vdwg.mxu0
      %615 = vmatprep.subr.bf16.mxu0 0
      %616 = vmatpush1.bf16.msra.mxu0 %v518
      %617 = vmatprep.subr.bf16.mxu0 0
      %618 = vmatpush1.bf16.msra.mxu0 %v519
      %619 = vmatprep.subr.bf16.mxu0 0
      %620 = vmatpush1.bf16.msra.mxu0 %v520
      %621 = vmatprep.subr.bf16.mxu0 0
      %622 = vmatpush1.bf16.msra.mxu0 %v521
      %623 = vmatprep.subr.bf16.mxu0 0
      %624 = vmatpush1.bf16.msra.mxu0 %v522
      %625 = vmatprep.subr.bf16.mxu0 0
      %626 = vmatpush1.bf16.msra.mxu0 %v523
      %627 = vmatprep.subr.bf16.mxu0 0
      %628 = vmatpush1.bf16.msra.mxu0 %v524
      %629 = vmatprep.subr.bf16.mxu0 0
      %630 = vmatpush1.bf16.msra.mxu0 %v525
      %631 = vmatprep.subr.bf16.mxu0 0
      %632 = vmatpush1.bf16.msra.mxu0 0
      %633 = vmatprep.subr.bf16.mxu0 0
      %634 = vmatpush1.bf16.msra.mxu0 0
      %635 = vmatprep.subr.bf16.mxu0 0
      %636 = vmatpush1.bf16.msra.mxu0 0
      %637 = vmatprep.subr.bf16.mxu0 0
      %638 = vmatpush1.bf16.msra.mxu0 0
      %639 = vmatprep.subr.bf16.mxu0 0
      %640 = vmatpush1.bf16.msra.mxu0 0
      %641 = vmatprep.subr.bf16.mxu0 0
      %642 = vmatpush1.bf16.msra.mxu0 0
      %643 = vmatprep.subr.bf16.mxu0 0
      %644 = vmatpush1.bf16.msra.mxu0 0
      %645 = vmatprep.subr.bf16.mxu0 0
      %646 = vmatpush1.bf16.msra.mxu0 0
      %647 = vmatprep.mubr.bf16.mxu0 0
      %648 = vmatmul.mubr.bf16.gmra.mrb[0].mxu0 %v384
      %v649 = vpop.f32.mrb[0].mxu0
      %v650 = vadd.f32 %v585, %v649
      %v651 = vpop.f32.mrb[0].mxu0
      %v652 = vpop.f32.mrb[0].mxu0
      %v653 = vadd.f32 %v588, %v652
      %v654 = vpop.f32.mrb[0].mxu0
      %655 = vmatprep.mubr.bf16.mxu0 0
      %656 = vmatmul.mubr.bf16.gmra.mrb[0].mxu0 %v387
      %v657 = vpop.f32.mrb[0].mxu0
      %v658 = vadd.f32 %v593, %v657
      %v659 = vpop.f32.mrb[0].mxu0
      %v660 = vpop.f32.mrb[0].mxu0
      %v661 = vadd.f32 %v596, %v660
      %v662 = vpop.f32.mrb[0].mxu0
      %663 = vmatprep.mubr.bf16.mxu0 0
      %664 = vmatmul.mubr.bf16.gmra.mrb[0].mxu0 %v390
      %v665 = vpop.f32.mrb[0].mxu0
      %v666 = vadd.f32 %v601, %v665
      %v667 = vpop.f32.mrb[0].mxu0
      %v668 = vpop.f32.mrb[0].mxu0
      %v669 = vadd.f32 %v604, %v668
      %v670 = vpop.f32.mrb[0].mxu0
      %671 = vmatprep.mubr.bf16.mxu0 0
      %672 = vmatmul.mubr.bf16.gmra.mrb[0].mxu0 %v393
      %v673 = vpop.f32.mrb[0].mxu0
      %v674 = vadd.f32 %v609, %v673
      %v675 = vpop.f32.mrb[0].mxu0
      %v676 = vpop.f32.mrb[0].mxu0
      %v677 = vadd.f32 %v612, %v676
      %v678 = vpop.f32.mrb[0].mxu0
      %679 = vdwg.mxu0
      %v680 = vld [vmem:[%s266] sm:$0xf]
      %v681 = vld [vmem:[%s266 + $0x4] sm:$0xf]
      %v682 = vld [vmem:[%s266 + $0x8] sm:$0xf]
      %v683 = vld [vmem:[%s266 + $0xc] sm:$0xf]
      %v684 = vld [vmem:[%s266 + $0x10] sm:$0xf]
      %v685 = vld [vmem:[%s266 + $0x14] sm:$0xf]
      %v686 = vld [vmem:[%s266 + $0x18] sm:$0xf]
      %v687 = vld [vmem:[%s266 + $0x1c] sm:$0xf]
      %v688 = vld [vmem:[%s3] sm:$0xf]
      %v689 = vld [vmem:[%s3 + $0x4] sm:$0xf]
      %v690 = vld [vmem:[%s3 + $0x8] sm:$0xf]
      %v691 = vld [vmem:[%s3 + $0xc] sm:$0xf]
      %v692 = vlaneseq
      %v693 = vshrl.u32 %v692, 7
      %v694 = vsub.s32 1, %v693
      %v695 = vrot.slane %v273, %v694
      %v704 = vunpack.c.l.b16 %v680
      %v705 = vunpack.c.l.b16 %v681
      %v706 = vunpack.c.l.b16 %v682
      %v707 = vunpack.c.l.b16 %v683
      %v708 = vunpack.c.l.b16 %v684
      %v709 = vunpack.c.l.b16 %v685
      %v710 = vunpack.c.l.b16 %v686
      %v711 = vunpack.c.l.b16 %v687
      %v712 = vpack.c.b16 %v705, %v704
      %v713 = vpack.c.b16 %v707, %v706
      %v714 = vpack.c.b16 %v709, %v708
      %v715 = vpack.c.b16 %v711, %v710
      %v720 = vunpack.c.l.b16 %v688
      %v721 = vunpack.c.l.b16 %v689
      %v722 = vunpack.c.l.b16 %v690
      %v723 = vunpack.c.l.b16 %v691
      %v724 = vpack.c.b16 %v721, %v720
      %v725 = vpack.c.b16 %v723, %v722
      %vm728 = vcmask 261120
      %v730 = vsel %vm728, %v712, 0
      %v733 = vsel %vm728, %v713, 0
      %v736 = vsel %vm728, %v714, 0
      %v739 = vsel %vm728, %v715, 0
      %741 = vmatprep.subr.bf16.mxu0 0
      %742 = vmatpush1.bf16.msra.mxu0 %v724
      %743 = vmatprep.subr.bf16.mxu0 0
      %744 = vmatpush1.bf16.msra.mxu0 %v725
      %745 = vmatprep.subr.bf16.mxu0 0
      %746 = vmatpush1.bf16.msra.mxu0 0
      %747 = vmatprep.subr.bf16.mxu0 0
      %748 = vmatpush1.bf16.msra.mxu0 0
      %749 = vmatprep.subr.bf16.mxu0 0
      %750 = vmatpush1.bf16.msra.mxu0 0
      %751 = vmatprep.subr.bf16.mxu0 0
      %752 = vmatpush1.bf16.msra.mxu0 0
      %753 = vmatprep.subr.bf16.mxu0 0
      %754 = vmatpush1.bf16.msra.mxu0 0
      %755 = vmatprep.subr.bf16.mxu0 0
      %756 = vmatpush1.bf16.msra.mxu0 0
      %757 = vmatprep.subr.bf16.mxu0 0
      %758 = vmatpush1.bf16.msra.mxu0 0
      %759 = vmatprep.subr.bf16.mxu0 0
      %760 = vmatpush1.bf16.msra.mxu0 0
      %761 = vmatprep.subr.bf16.mxu0 0
      %762 = vmatpush1.bf16.msra.mxu0 0
      %763 = vmatprep.subr.bf16.mxu0 0
      %764 = vmatpush1.bf16.msra.mxu0 0
      %765 = vmatprep.subr.bf16.mxu0 0
      %766 = vmatpush1.bf16.msra.mxu0 0
      %767 = vmatprep.subr.bf16.mxu0 0
      %768 = vmatpush1.bf16.msra.mxu0 0
      %769 = vmatprep.subr.bf16.mxu0 0
      %770 = vmatpush1.bf16.msra.mxu0 0
      %771 = vmatprep.subr.bf16.mxu0 0
      %772 = vmatpush1.bf16.msra.mxu0 0
      %773 = vmatprep.mubr.bf16.mxu0 0
      %774 = vmatmul.mubr.bf16.gmra.mrb[0].mxu0 %v730
      %v775 = vpop.f32.mrb[0].mxu0
      %v776 = vadd.f32 %v695, %v775
      %v777 = vpop.f32.mrb[0].mxu0
      %v778 = vpop.f32.mrb[0].mxu0
      %v779 = vadd.f32 %v695, %v778
      %v780 = vpop.f32.mrb[0].mxu0
      %781 = vmatprep.mubr.bf16.mxu0 0
      %782 = vmatmul.mubr.bf16.gmra.mrb[0].mxu0 %v733
      %v783 = vpop.f32.mrb[0].mxu0
      %v784 = vadd.f32 %v695, %v783
      %v785 = vpop.f32.mrb[0].mxu0
      %v786 = vpop.f32.mrb[0].mxu0
      %v787 = vadd.f32 %v695, %v786
      %v788 = vpop.f32.mrb[0].mxu0
      %789 = vmatprep.mubr.bf16.mxu0 0
      %790 = vmatmul.mubr.bf16.gmra.mrb[0].mxu0 %v736
      %v791 = vpop.f32.mrb[0].mxu0
      %v792 = vadd.f32 %v695, %v791
      %v793 = vpop.f32.mrb[0].mxu0
      %v794 = vpop.f32.mrb[0].mxu0
      %v795 = vadd.f32 %v695, %v794
      %v796 = vpop.f32.mrb[0].mxu0
      %797 = vmatprep.mubr.bf16.mxu0 0
      %798 = vmatmul.mubr.bf16.gmra.mrb[0].mxu0 %v739
      %v799 = vpop.f32.mrb[0].mxu0
      %v800 = vadd.f32 %v695, %v799
      %v801 = vpop.f32.mrb[0].mxu0
      %v802 = vpop.f32.mrb[0].mxu0
      %v803 = vadd.f32 %v695, %v802
      %v804 = vpop.f32.mrb[0].mxu0
      %805 = vdwg.mxu0
      %v806 = vadd.f32 %v650, %v653
      %v807 = vadd.f32 %v806, %v658
      %v808 = vadd.f32 %v807, %v661
      %v809 = vadd.f32 %v808, %v666
      %v810 = vadd.f32 %v809, %v669
      %v811 = vadd.f32 %v810, %v674
      %v812 = vadd.f32 %v811, %v677
      %v813 = vrot.slane %v812, 4
      %v814 = vadd.f32 %v812, %v813
      %v815 = vrot.slane %v814, 2
      %v816 = vadd.f32 %v814, %v815
      %v817 = vrot.slane %v816, 1
      %v818 = vadd.f32 %v816, %v817
      %v819 = vmul.f32 %v650, %v650
      %v820 = vmul.f32 %v653, %v653
      %v821 = vmul.f32 %v658, %v658
      %v822 = vmul.f32 %v661, %v661
      %v823 = vmul.f32 %v666, %v666
      %v824 = vmul.f32 %v669, %v669
      %v825 = vmul.f32 %v674, %v674
      %v826 = vmul.f32 %v677, %v677
      %v827 = vadd.f32 %v819, %v820
      %v828 = vadd.f32 %v827, %v821
      %v829 = vadd.f32 %v828, %v822
      %v830 = vadd.f32 %v829, %v823
      %v831 = vadd.f32 %v830, %v824
      %v832 = vadd.f32 %v831, %v825
      %v833 = vadd.f32 %v832, %v826
      %v834 = vrot.slane %v833, 4
      %v835 = vadd.f32 %v833, %v834
      %v836 = vrot.slane %v835, 2
      %v837 = vadd.f32 %v835, %v836
      %v838 = vrot.slane %v837, 1
      %v839 = vadd.f32 %v837, %v838
      %vm840 = vcmask 1040384
      %v841 = vsel %vm840, %v818, %v839
      %v842 = vld [vmem:[%s5] sm:$0xff]
      %v843 = vld [vmem:[%s5 + $0x8] sm:$0xff]
      %v844 = vld [vmem:[%s5 + $0x10] sm:$0xff]
      %v845 = vld [vmem:[%s5 + $0x18] sm:$0xff]
      %v846 = vld [vmem:[%s5 + $0x20] sm:$0xff]
      %v847 = vld [vmem:[%s5 + $0x28] sm:$0xff]
      %v848 = vld [vmem:[%s5 + $0x30] sm:$0xff]
      %v849 = vld [vmem:[%s5 + $0x38] sm:$0xff]
      %v850 = vld [vmem:[%s5 + $0x40] sm:$0xff]
      %v851 = vld [vmem:[%s5 + $0x48] sm:$0xff]
      %v852 = vld [vmem:[%s5 + $0x50] sm:$0xff]
      %v853 = vld [vmem:[%s5 + $0x58] sm:$0xff]
      %v854 = vld [vmem:[%s5 + $0x60] sm:$0xff]
      %v855 = vld [vmem:[%s5 + $0x68] sm:$0xff]
      %v856 = vld [vmem:[%s5 + $0x70] sm:$0xff]
      %v857 = vld [vmem:[%s5 + $0x78] sm:$0xff]
      %858 = vmatprep.subr.mxu0 0.0
      %859 = vmatpush1.msra.mxu0 %v842
      %860 = vmatprep.subr.mxu0 0.0
      %861 = vmatpush1.msra.mxu0 %v843
      %862 = vmatprep.subr.mxu0 0.0
      %863 = vmatpush1.msra.mxu0 %v844
      %864 = vmatprep.subr.mxu0 0.0
      %865 = vmatpush1.msra.mxu0 %v845
      %866 = vmatprep.subr.mxu0 0.0
      %867 = vmatpush1.msra.mxu0 %v846
      %868 = vmatprep.subr.mxu0 0.0
      %869 = vmatpush1.msra.mxu0 %v847
      %870 = vmatprep.subr.mxu0 0.0
      %871 = vmatpush1.msra.mxu0 %v848
      %872 = vmatprep.subr.mxu0 0.0
      %873 = vmatpush1.msra.mxu0 %v849
      %874 = vmatprep.subr.mxu0 0.0
      %875 = vmatpush1.msra.mxu0 %v850
      %876 = vmatprep.subr.mxu0 0.0
      %877 = vmatpush1.msra.mxu0 %v851
      %878 = vmatprep.subr.mxu0 0.0
      %879 = vmatpush1.msra.mxu0 %v852
      %880 = vmatprep.subr.mxu0 0.0
      %881 = vmatpush1.msra.mxu0 %v853
      %882 = vmatprep.subr.mxu0 0.0
      %883 = vmatpush1.msra.mxu0 %v854
      %884 = vmatprep.subr.mxu0 0.0
      %885 = vmatpush1.msra.mxu0 %v855
      %886 = vmatprep.subr.mxu0 0.0
      %887 = vmatpush1.msra.mxu0 %v856
      %888 = vmatprep.subr.mxu0 0.0
      %889 = vmatpush1.msra.mxu0 %v857
      %890 = vmatprep.subr.mxu0 0.0
      %891 = vmatpush1.msra.mxu0 0.0
      %892 = vmatprep.subr.mxu0 0.0
      %893 = vmatpush1.msra.mxu0 0.0
      %894 = vmatprep.subr.mxu0 0.0
      %895 = vmatpush1.msra.mxu0 0.0
      %896 = vmatprep.subr.mxu0 0.0
      %897 = vmatpush1.msra.mxu0 0.0
      %898 = vmatprep.subr.mxu0 0.0
      %899 = vmatpush1.msra.mxu0 0.0
      %900 = vmatprep.subr.mxu0 0.0
      %901 = vmatpush1.msra.mxu0 0.0
      %902 = vmatprep.subr.mxu0 0.0
      %903 = vmatpush1.msra.mxu0 0.0
      %904 = vmatprep.subr.mxu0 0.0
      %905 = vmatpush1.msra.mxu0 0.0
      %906 = vmatprep.subr.mxu0 0.0
      %907 = vmatpush1.msra.mxu0 0.0
      %908 = vmatprep.subr.mxu0 0.0
      %909 = vmatpush1.msra.mxu0 0.0
      %910 = vmatprep.subr.mxu0 0.0
      %911 = vmatpush1.msra.mxu0 0.0
      %912 = vmatprep.subr.mxu0 0.0
      %913 = vmatpush1.msra.mxu0 0.0
      %914 = vmatprep.subr.mxu0 0.0
      %915 = vmatpush1.msra.mxu0 0.0
      %916 = vmatprep.subr.mxu0 0.0
      %917 = vmatpush1.msra.mxu0 0.0
      %918 = vmatprep.subr.mxu0 0.0
      %919 = vmatpush1.msra.mxu0 0.0
      %920 = vmatprep.subr.mxu0 0.0
      %921 = vmatpush1.msra.mxu0 0.0
      %922 = vmatprep.mubr.f32.mxu0 0.0
      %923 = vmatmul.mubr.f32.gmra.mrb[0].mxu0 %v841
      %v924 = vpop.f32.mrb[0].mxu0
      %v925 = vadd.f32 0.0, %v924
      %v926 = vpop.f32.mrb[0].mxu0
      %927 = vdwg.mxu0
      %v928 = vmul.f32 %v925, 0.00048828125
      %v929 = vmul.f32 %v928, %v928
      %v931 = vrot.slane %v929, 7
      %v933 = vsub.f32 %v928, %v931
      %v934 = vlaneseq
      %v935 = vshrl.u32 %v934, 7
      %v936 = vsub.s32 0, %v935
      %v937 = vrot.slane %v928, %v936
      %v938 = vsub.f32 %v650, %v937
      %v939 = vsub.f32 %v653, %v937
      %v940 = vsub.f32 %v658, %v937
      %v941 = vsub.f32 %v661, %v937
      %v942 = vsub.f32 %v666, %v937
      %v943 = vsub.f32 %v669, %v937
      %v944 = vsub.f32 %v674, %v937
      %v945 = vsub.f32 %v677, %v937
      %v946 = vadd.f32 %v933, 1e-05
      %v947 = vrsqrt.pop %v946
      %v948 = vlaneseq
      %v949 = vshrl.u32 %v948, 7
      %v950 = vsub.s32 1, %v949
      %v951 = vrot.slane %v947, %v950
      %v952 = vmul.f32 %v938, %v951
      %v953 = vmul.f32 %v939, %v951
      %v954 = vmul.f32 %v940, %v951
      %v955 = vmul.f32 %v941, %v951
      %v956 = vmul.f32 %v942, %v951
      %v957 = vmul.f32 %v943, %v951
      %v958 = vmul.f32 %v944, %v951
      %v959 = vmul.f32 %v945, %v951
      %v960 = vlaneseq
      %v961 = vshrl.u32 %v960, 7
      %v962 = vsub.s32 2, %v961
      %v963 = vrot.slane %v273, %v962
      %v964 = vmul.f32 %v952, %v963
      %v965 = vmul.f32 %v953, %v963
      %v966 = vmul.f32 %v954, %v963
      %v967 = vmul.f32 %v955, %v963
      %v968 = vmul.f32 %v956, %v963
      %v969 = vmul.f32 %v957, %v963
      %v970 = vmul.f32 %v958, %v963
      %v971 = vmul.f32 %v959, %v963
      %v972 = vlaneseq
      %v973 = vshrl.u32 %v972, 7
      %v974 = vsub.s32 3, %v973
      %v975 = vrot.slane %v273, %v974
      %v976 = vadd.f32 %v964, %v975
      %v977 = vadd.f32 %v965, %v975
      %v978 = vadd.f32 %v966, %v975
      %v979 = vadd.f32 %v967, %v975
      %v980 = vadd.f32 %v968, %v975
      %v981 = vadd.f32 %v969, %v975
      %v982 = vadd.f32 %v970, %v975
      %v983 = vadd.f32 %v971, %v975
      %v984 = vsub.f32 0.0, %v976
      %v985 = vsub.f32 0.0, %v977
      %v986 = vsub.f32 0.0, %v978
      %v987 = vsub.f32 0.0, %v979
      %v988 = vsub.f32 0.0, %v980
      %v989 = vsub.f32 0.0, %v981
      %v990 = vsub.f32 0.0, %v982
      %v991 = vsub.f32 0.0, %v983
      %v992 = vmul.f32 %v984, 1.442695
      %v993 = vpow.pop %v992
      %v994 = vmul.f32 %v985, 1.442695
      %v995 = vpow.pop %v994
      %v996 = vmul.f32 %v986, 1.442695
      %v997 = vpow.pop %v996
      %v998 = vmul.f32 %v987, 1.442695
      %v999 = vpow.pop %v998
      %v1000 = vmul.f32 %v988, 1.442695
      %v1001 = vpow.pop %v1000
      %v1002 = vmul.f32 %v989, 1.442695
      %v1003 = vpow.pop %v1002
      %v1004 = vmul.f32 %v990, 1.442695
      %v1005 = vpow.pop %v1004
      %v1006 = vmul.f32 %v991, 1.442695
      %v1007 = vpow.pop %v1006
      %v1008 = vadd.f32 %v993, 1.0
      %v1009 = vadd.f32 %v995, 1.0
      %v1010 = vadd.f32 %v997, 1.0
      %v1011 = vadd.f32 %v999, 1.0
      %v1012 = vadd.f32 %v1001, 1.0
      %v1013 = vadd.f32 %v1003, 1.0
      %v1014 = vadd.f32 %v1005, 1.0
      %v1015 = vadd.f32 %v1007, 1.0
      %v1016 = vrcp.pop %v1008
      %v1017 = vmul.f32 1.0, %v1016
      %v1018 = vrcp.pop %v1009
      %v1019 = vmul.f32 1.0, %v1018
      %v1020 = vrcp.pop %v1010
      %v1021 = vmul.f32 1.0, %v1020
      %v1022 = vrcp.pop %v1011
      %v1023 = vmul.f32 1.0, %v1022
      %v1024 = vrcp.pop %v1012
      %v1025 = vmul.f32 1.0, %v1024
      %v1026 = vrcp.pop %v1013
      %v1027 = vmul.f32 1.0, %v1026
      %v1028 = vrcp.pop %v1014
      %v1029 = vmul.f32 1.0, %v1028
      %v1030 = vrcp.pop %v1015
      %v1031 = vmul.f32 1.0, %v1030
      %v1032 = vmul.f32 %v976, %v1017
      %v1033 = vmul.f32 %v977, %v1019
      %v1034 = vmul.f32 %v978, %v1021
      %v1035 = vmul.f32 %v979, %v1023
      %v1036 = vmul.f32 %v980, %v1025
      %v1037 = vmul.f32 %v981, %v1027
      %v1038 = vmul.f32 %v982, %v1029
      %v1039 = vmul.f32 %v983, %v1031
      %v1040 = vsub.f32 0.0, %v1032
      %v1041 = vsub.f32 0.0, %v1033
      %v1042 = vsub.f32 0.0, %v1034
      %v1043 = vsub.f32 0.0, %v1035
      %v1044 = vsub.f32 0.0, %v1036
      %v1045 = vsub.f32 0.0, %v1037
      %v1046 = vsub.f32 0.0, %v1038
      %v1047 = vsub.f32 0.0, %v1039
      %v1048 = vmul.f32 %v1040, 1.442695
      %v1049 = vpow.pop %v1048
      %v1050 = vmul.f32 %v1041, 1.442695
      %v1051 = vpow.pop %v1050
      %v1052 = vmul.f32 %v1042, 1.442695
      %v1053 = vpow.pop %v1052
      %v1054 = vmul.f32 %v1043, 1.442695
      %v1055 = vpow.pop %v1054
      %v1056 = vmul.f32 %v1044, 1.442695
      %v1057 = vpow.pop %v1056
      %v1058 = vmul.f32 %v1045, 1.442695
      %v1059 = vpow.pop %v1058
      %v1060 = vmul.f32 %v1046, 1.442695
      %v1061 = vpow.pop %v1060
      %v1062 = vmul.f32 %v1047, 1.442695
      %v1063 = vpow.pop %v1062
      %v1064 = vadd.f32 %v1049, 1.0
      %v1065 = vadd.f32 %v1051, 1.0
      %v1066 = vadd.f32 %v1053, 1.0
      %v1067 = vadd.f32 %v1055, 1.0
      %v1068 = vadd.f32 %v1057, 1.0
      %v1069 = vadd.f32 %v1059, 1.0
      %v1070 = vadd.f32 %v1061, 1.0
      %v1071 = vadd.f32 %v1063, 1.0
      %v1072 = vrcp.pop %v1064
      %v1073 = vmul.f32 1.0, %v1072
      %v1074 = vrcp.pop %v1065
      %v1075 = vmul.f32 1.0, %v1074
      %v1076 = vrcp.pop %v1066
      %v1077 = vmul.f32 1.0, %v1076
      %v1078 = vrcp.pop %v1067
      %v1079 = vmul.f32 1.0, %v1078
      %v1080 = vrcp.pop %v1068
      %v1081 = vmul.f32 1.0, %v1080
      %v1082 = vrcp.pop %v1069
      %v1083 = vmul.f32 1.0, %v1082
      %v1084 = vrcp.pop %v1070
      %v1085 = vmul.f32 1.0, %v1084
      %v1086 = vrcp.pop %v1071
      %v1087 = vmul.f32 1.0, %v1086
      %v1088 = vmul.f32 %v1032, %v1073
      %v1089 = vmul.f32 %v1033, %v1075
      %v1090 = vmul.f32 %v1034, %v1077
      %v1091 = vmul.f32 %v1035, %v1079
      %v1092 = vmul.f32 %v1036, %v1081
      %v1093 = vmul.f32 %v1037, %v1083
      %v1094 = vmul.f32 %v1038, %v1085
      %v1095 = vmul.f32 %v1039, %v1087
      %v1096 = vadd.f32 %v1088, %v776
      %v1097 = vadd.f32 %v1089, %v779
      %v1098 = vadd.f32 %v1090, %v784
      %v1099 = vadd.f32 %v1091, %v787
      %v1100 = vadd.f32 %v1092, %v792
      %v1101 = vadd.f32 %v1093, %v795
      %v1102 = vadd.f32 %v1094, %v800
      %v1103 = vadd.f32 %v1095, %v803
      %1104 = vst [vmem:[%s271] sm:$0xff] %v1096
      %1105 = vst [vmem:[%s271 + $0x8] sm:$0xff] %v1097
      %1106 = vst [vmem:[%s271 + $0x10] sm:$0xff] %v1098
      %1107 = vst [vmem:[%s271 + $0x18] sm:$0xff] %v1099
      %1108 = vst [vmem:[%s271 + $0x20] sm:$0xff] %v1100
      %1109 = vst [vmem:[%s271 + $0x28] sm:$0xff] %v1101
      %1110 = vst [vmem:[%s271 + $0x30] sm:$0xff] %v1102
      %1111 = vst [vmem:[%s271 + $0x38] sm:$0xff] %v1103
      %p1112 = scmp.lt.s32.totalorder %s17, 1
      %s1113 = scalar_select %p1112, %s17, 1
      %s1114 = smul.addr %s1113, 8
      %s1115 = smul.addr %s1114, 8
      %s1116 = scalar_lea.vmem %s6, %s1115
      // Predicated region
      $region45: #{_lambda_.1} parent=43 // pred_check
        %p1117 = pneg %p171
      $region46: #{_lambda_.1} parent=43 // pred_check_branch
        %1119 = sbr.rel (%p1117) target = $region48
      $region47: #{_lambda_.1} parent=43 // pred_region
        _
      $region48: #{_lambda_.1} parent=43 // pred_fallthru
        _
    $region44: #{_lambda_.1} parent=5 // pred_fallthru
      _
    %p1120 = scmp.le.s32.totalorder 2, %s12
    // Predicated region
    $region49: #{_lambda_.1} parent=5 // pred_check
      %p1121 = pneg %p1120
    $region50: #{_lambda_.1} parent=5 // pred_check_branch
      %1123 = sbr.rel (%p1121) target = $region52
    $region51: #{_lambda_.1} parent=5 // pred_region
      %s1124 = ssub.s32 %s12, 2
      // Predicated region
      $region53: #{_lambda_.1} parent=51 // pred_check
        %p1125 = pneg %p177
      $region54: #{_lambda_.1} parent=51 // pred_check_branch
        %1127 = sbr.rel (%p1125) target = $region56
      $region55: #{_lambda_.1} parent=51 // pred_region
        %p1128 = scmp.lt.s32.totalorder %s18, 1
        %s1129 = scalar_select %p1128, %s18, 1
        %s1130 = smul.addr %s1129, 8
        %s1131 = smul.addr %s1130, 8
        %s1132 = scalar_lea.vmem %s6, %s1131
      $region56: #{_lambda_.1} parent=51 // pred_fallthru
        _
    $region52: #{_lambda_.1} parent=5 // pred_fallthru
      _
  $region6: #{_lambda_.1} parent=0 // loop_footer
    %s16 = sadd.s32 1, %s12
  $region7: #{_lambda_.1} parent=0 // loop_footer_branch
    %11 = sbr.rel target = $region3
  $region8: #{_lambda_.1} parent=0 // loop_exit
    _

</llo_original>
